<compile_context>
chip_gen: v6e
topology: v6e:2x2x1
jax: 0.10.0
libtpu: 0.0.40
codegen_flags: <defaults>
</compile_context>

<pallas_src>
import jax
import jax.numpy as jnp
from jax.experimental import pallas as pl
from jax.experimental.pallas import tpu as pltpu


def _step_gf_kernel(m_ref, s_ref, x_ref, o_ref):
    # m_ref, s_ref: (1, 1) f32 scalars in SMEM
    # x_ref, o_ref: (block_rows, lanes) tiles in VMEM
    m = m_ref[0, 0]
    s = s_ref[0, 0]
    # Compare in f32 (no-op cast for f32 inputs; VALU has plenty of slack).
    x = x_ref[...].astype(jnp.float32)
    one = jnp.asarray(1.0, o_ref.dtype)
    minus_one = jnp.asarray(-1.0, o_ref.dtype)
    o_ref[...] = jnp.where(jnp.abs(x - m) <= s, one, minus_one)


def _step_gf_eltwise(x, m32, s32, out_dtype):
    """Tiny XLA fallback/epilogue with identical semantics to the kernel."""
    cond = jnp.abs(x.astype(jnp.float32) - m32) <= s32
    return jnp.where(cond,
                     jnp.asarray(1.0, out_dtype),
                     jnp.asarray(-1.0, out_dtype))


def _tpu_vmem_capacity_bytes():
    try:
        return int(pltpu.get_tpu_info().vmem_capacity_bytes)
    except Exception:
        # Conservative (v7x-sized) fallback.
        return 64 * 1024 * 1024


_MIB = 1024 * 1024
_LANE_CANDIDATES = (1024, 512, 256, 128)


def step_gf(x, m, s):
    """Apply Step_GF elementwise: (|x - m| <= s) * 2 - 1.

    x: any-shaped float array (e.g. NCHW). m, s: scalar parameters.
    """
    orig_shape = x.shape
    dtype = x.dtype
    n_elem = x.size
    itemsize = jnp.dtype(dtype).itemsize

    # Parameters stay in f32 for the comparison (matches f32 PyTorch params).
    m32 = jnp.asarray(m, jnp.float32).reshape(1, 1)
    s32 = jnp.asarray(s, jnp.float32).reshape(1, 1)

    # Widest lane-dense last dim that divides the element count, so the
    # common NCHW case needs no copies at all.
    lanes = 128
    for cand in _LANE_CANDIDATES:
        if n_elem % cand == 0:
            lanes = cand
            break

    x_flat = jnp.ravel(x)
    n_main = (n_elem // lanes) * lanes  # lane-aligned prefix handled by kernel

    if n_main == 0:
        # Fewer than 128 elements: no legal lane-dense tile; pure XLA.
        out = _step_gf_eltwise(x_flat, m32[0, 0], s32[0, 0], dtype)
        return out.reshape(orig_shape)

    n_rows = n_main // lanes

    # Sublane alignment by dtype packing: 8 (f32), 16 (bf16/f16), 32 (int8).
    align = 8 * max(1, 4 // itemsize)

    # Generation-aware block size: ~VMEM/8 per block (in+out double-buffered
    # = 4x block -> ~half of physical VMEM), clamped to [4 MiB, 16 MiB].
    vmem_cap = _tpu_vmem_capacity_bytes()
    block_bytes = max(4 * _MIB, min(16 * _MIB, vmem_cap // 8))

    target_rows = max(align, (block_bytes // (lanes * itemsize)) // align * align)

    if n_rows <= target_rows:
        block_rows = n_rows  # single full-array block (always tiling-legal)
        # v7x megacore: ensure >= 2 grid steps when it can be done with
        # sublane-aligned blocks, so both TensorCores get work.
        if n_rows >= 2 * align:
            half = pl.cdiv(n_rows, 2)
            block_rows = pl.cdiv(half, align) * align
    else:
        block_rows = target_rows  # aligned; partial last block is fine

    grid = (pl.cdiv(n_rows, block_rows),)

    # Right-size the scoped-VMEM budget: 2 buffers each for input and output
    # tiles plus a little slack; floor at 16 MiB (covers v5e's low default).
    block_bytes_used = block_rows * lanes * itemsize
    vmem_limit = max(16 * _MIB, min(vmem_cap, 4 * block_bytes_used + 4 * _MIB))

    cost = pl.CostEstimate(
        flops=3 * n_main,
        transcendentals=0,
        bytes_accessed=2 * n_main * itemsize,
    )

    x2d = (x_flat if n_main == n_elem else x_flat[:n_main]).reshape(n_rows, lanes)

    out2d = pl.pallas_call(
        _step_gf_kernel,
        out_shape=jax.ShapeDtypeStruct((n_rows, lanes), dtype),
        grid_spec=pltpu.PrefetchScalarGridSpec(
            num_scalar_prefetch=0,
            grid=grid,
            in_specs=[
                pl.BlockSpec(memory_space=pltpu.SMEM),                # m (f32)
                pl.BlockSpec(memory_space=pltpu.SMEM),                # s (f32)
                pl.BlockSpec((block_rows, lanes), lambda i: (i, 0)),  # x tile
            ],
            out_specs=pl.BlockSpec((block_rows, lanes), lambda i: (i, 0)),
        ),
        compiler_params=pltpu.CompilerParams(
            dimension_semantics=("parallel",),
            vmem_limit_bytes=vmem_limit,
        ),
        cost_estimate=cost,
    )(m32, s32, x2d)

    out_flat = out2d.reshape(-1)
    if n_main != n_elem:
        # Ragged tail (< 128 elements): tiny XLA epilogue, no full-array pad.
        tail = _step_gf_eltwise(x_flat[n_main:], m32[0, 0], s32[0, 0], dtype)
        out_flat = jnp.concatenate([out_flat, tail])
    return out_flat.reshape(orig_shape)


def step_gf_reference(x, m, s):
    return (jnp.abs(x - m) <= s).astype(x.dtype) * 2.0 - 1.0


if __name__ == "__main__":
    key = jax.random.PRNGKey(0)
    kx, _, _ = jax.random.split(key, 3)

    # Small NCHW input consistent with the growth-function use case.
    N, C, H, W = 2, 4, 16, 16
    x = jax.random.uniform(kx, (N, C, H, W), dtype=jnp.float32)

    # Deterministic parameter initialization (scalars m, s).
    m = jnp.float32(0.5)   # center of the step window
    s = jnp.float32(0.15)  # half-width of the step window

    out = step_gf(x, m, s)
    out = jax.block_until_ready(out)

    ref = step_gf_reference(x, m, s)
    assert out.shape == x.shape
    assert out.dtype == x.dtype
    assert bool(jnp.all(out == ref)), "mismatch vs reference"

    print("KERNEL_OK")
</pallas_src>

<mosaic_0001>
module attributes {stable_mosaic.version = 11 : i64} {
  func.func @_step_gf_kernel(%arg0: i32, %arg1: memref<1x1xf32, #tpu.memory_space<smem>>, %arg2: memref<1x1xf32, #tpu.memory_space<smem>>, %arg3: memref<2x1024xf32, #tpu.memory_space<vmem>>, %arg4: memref<2x1024xf32, #tpu.memory_space<vmem>>) attributes {dimension_semantics = [#tpu.dimension_semantics<parallel>], iteration_bounds = array<i64: 1>, scalar_prefetch = 0 : i64, scratch_operands = 0 : i64, tpu.core_type = #tpu.core_type<tc>, window_params = [{transform_indices = @transform_0, window_bounds = array<i64: 1, 1>}, {transform_indices = @transform_1, window_bounds = array<i64: 1, 1>}, {transform_indices = @transform_2, window_bounds = array<i64: 2, 1024>}, {transform_indices = @transform_3, window_bounds = array<i64: 2, 1024>}]} {
    %c0 = arith.constant 0 : index
    %c0_0 = arith.constant 0 : index
    %0 = memref.load %arg1[%c0, %c0_0] : memref<1x1xf32, #tpu.memory_space<smem>>
    %c0_1 = arith.constant 0 : index
    %c0_2 = arith.constant 0 : index
    %1 = memref.load %arg2[%c0_1, %c0_2] : memref<1x1xf32, #tpu.memory_space<smem>>
    %c0_3 = arith.constant 0 : index
    %c0_4 = arith.constant 0 : index
    %2 = vector.load %arg3[%c0_3, %c0_4] : memref<2x1024xf32, #tpu.memory_space<vmem>>, vector<2x1024xf32>
    %3 = vector.broadcast %0 : f32 to vector<2x1024xf32>
    %4 = arith.subf %2, %3 : vector<2x1024xf32>
    %5 = math.absf %4 : vector<2x1024xf32>
    %6 = vector.broadcast %1 : f32 to vector<2x1024xf32>
    %7 = arith.cmpf ole, %5, %6 : vector<2x1024xf32>
    %cst = arith.constant 1.000000e+00 : f32
    %cst_5 = arith.constant -1.000000e+00 : f32
    %8 = vector.broadcast %cst : f32 to vector<2x1024xf32>
    %9 = vector.broadcast %cst_5 : f32 to vector<2x1024xf32>
    %10 = arith.select %7, %8, %9 : vector<2x1024xi1>, vector<2x1024xf32>
    %c0_6 = arith.constant 0 : index
    %c0_7 = arith.constant 0 : index
    %11 = vector.load %arg4[%c0_6, %c0_7] : memref<2x1024xf32, #tpu.memory_space<vmem>>, vector<2x1024xf32>
    tpu.vector_store %arg4[%c0_6, %c0_7], %10 {strides = array<i32>} : memref<2x1024xf32, #tpu.memory_space<vmem>>, vector<2x1024xf32>,
    return
  }
  func.func @transform_0(%arg0: i32) -> (i32, i32) {
    %c0_i32 = arith.constant 0 : i32
    %c0_i32_0 = arith.constant 0 : i32
    %c0_i32_1 = arith.constant 0 : i32
    return %c0_i32, %c0_i32_0 : i32, i32
  }
  func.func @transform_1(%arg0: i32) -> (i32, i32) {
    %c0_i32 = arith.constant 0 : i32
    %c0_i32_0 = arith.constant 0 : i32
    %c0_i32_1 = arith.constant 0 : i32
    return %c0_i32, %c0_i32_0 : i32, i32
  }
  func.func @transform_2(%arg0: i32) -> (i32, i32) {
    %c0_i32 = arith.constant 0 : i32
    %c0_i32_0 = arith.constant 0 : i32
    return %arg0, %c0_i32 : i32, i32
  }
  func.func @transform_3(%arg0: i32) -> (i32, i32) {
    %c0_i32 = arith.constant 0 : i32
    %c0_i32_0 = arith.constant 0 : i32
    return %arg0, %c0_i32 : i32, i32
  }
}

</mosaic_0001>

<llo_original>
// kernel: tpu_custom_call.1
$region0: #{tpu_custom_call.1}
  #allocation0 [shape = 'u32[]', space=smem, size = 0x4, offset = 0x4, fixed_abs, tag = 'smem constant byte address 0x4 - core index']
  #allocation1 [shape = 'u32[144,128]{1,0:T(1,128)}', space=vmem, size = 0x12000, scoped, tag = 'internal scratch']
  #allocation2 [shape = 'f32[1,1]{1,0:T(1,128)S(6)}', space=smem, size = 0x200, scoped, tag = 'scoped memory for tpu_custom_call.1']
  #allocation3 [shape = 'f32[1,1]{1,0:T(1,128)S(6)}', space=smem, size = 0x200, scoped, tag = 'scoped memory for tpu_custom_call.1']
  %s0 = inlined_call_operand.<no memory space> [shape: f32[1,1], index: 0, kind: input, shape index: {}]
  %s1 = inlined_call_operand.<no memory space> [shape: f32[1,1], index: 1, kind: input, shape index: {}]
  %s2 = inlined_call_operand.hbm [shape: f32[2,1024], index: 2, kind: input, shape index: {}]
  %s3 = inlined_call_operand.hbm [shape: f32[2,1024], index: 3, kind: output, shape index: {}]
  %s4 = sld [smem:[#allocation0]]
  $region26: #{tpu_custom_call.1} parent=0
    _
  %s6 = ssub.s32 1, %s4
  %s7 = scalar_select 0, %s6, %s4
  %8 = sst [smem:[#allocation2]] %s0
  %9 = sst [smem:[#allocation3]] %s1
  $region1: #{tpu_custom_call.1} parent=0
    #allocation4 [shape = 'u8[8192]{0}', space=vmem, size = 0x2000, scoped, tag = 'input window, operand 2, single buffered']
    #allocation5 [shape = 's32[1]{0}', space=sflag, size = 0x4, scoped, tag = 'scoped memory for tpu_custom_call.1']
    #allocation6 [shape = 's32[1]{0}', space=sflag, size = 0x4, scoped, tag = 'scoped memory for tpu_custom_call.1']
    #allocation7 [shape = 'u8[8192]{0}', space=vmem, size = 0x2000, scoped, tag = 'output window, operand 0, single buffered']
    %10 = vsyncpa [#allocation5], 0
    %11 = vsyncpa [#allocation6], 0
    // Predicated region
    $region2: #{tpu_custom_call.1} parent=1 // pred_check
      _
    $region3: #{tpu_custom_call.1} parent=1 // pred_check_branch
      %13 = sbr.rel (0) target = $region5
    $region4: #{tpu_custom_call.1} parent=1 // pred_region
      _
    $region5: #{tpu_custom_call.1} parent=1 // pred_fallthru
      _
    // Predicated region
    $region6: #{tpu_custom_call.1} parent=1 // pred_check
      _
    $region7: #{tpu_custom_call.1} parent=1 // pred_check_branch
      %15 = sbr.rel (0) target = $region9
    $region8: #{tpu_custom_call.1} parent=1 // pred_region
      _
    $region9: #{tpu_custom_call.1} parent=1 // pred_fallthru
      _
    // Predicated region
    $region10: #{tpu_custom_call.1} parent=1 // pred_check
      _
    $region11: #{tpu_custom_call.1} parent=1 // pred_check_branch
      %17 = sbr.rel (0) target = $region13
    $region12: #{tpu_custom_call.1} parent=1 // pred_region
      %s19 = ssub.s32 256, 256
      %20 = vsyncadd [#allocation5], %s19
      %s22 = sshll.u32 [#allocation4], 4
      %s23 = int_to_ptr.vmem [resolvable:$true] %s22
      %25 = dma.hbm_to_vmem [thread:$0]  %s2, 256, %s23, [#allocation5]
    $region13: #{tpu_custom_call.1} parent=1 // pred_fallthru
      _
    // Predicated region
    $region14: #{tpu_custom_call.1} parent=1 // pred_check
      _
    $region15: #{tpu_custom_call.1} parent=1 // pred_check_branch
      %27 = sbr.rel (0) target = $region17
    $region16: #{tpu_custom_call.1} parent=1 // pred_region
      %28 = dma.done [#allocation5], 256
    $region17: #{tpu_custom_call.1} parent=1 // pred_fallthru
      _
    %s29 = sld [smem:[#allocation2]]
    %s30 = sld [smem:[#allocation3]]
    %v31 = vld [vmem:[#allocation4] sm:$0xff]
    %v32 = vld [vmem:[#allocation4 + $0x8] sm:$0xff]
    %v33 = vstv %s29
    %v34 = vsub.f32 %v31, %v33
    %v35 = vsub.f32 %v32, %v33
    %v36 = vand.u32 2147483647, %v34
    %v37 = vand.u32 2147483647, %v35
    %v38 = vstv %s30
    %vm39 = vcmp.le.f32.partialorder %v36, %v38
    %vm40 = vcmp.le.f32.partialorder %v37, %v38
    %v41 = vsel %vm39, 1.0, -1.0
    %v42 = vsel %vm40, 1.0, -1.0
    %43 = vst [vmem:[#allocation7] sm:$0xff] %v41
    %44 = vst [vmem:[#allocation7 + $0x8] sm:$0xff] %v42
    // Predicated region
    $region18: #{tpu_custom_call.1} parent=1 // pred_check
      _
    $region19: #{tpu_custom_call.1} parent=1 // pred_check_branch
      %46 = sbr.rel (0) target = $region21
    $region20: #{tpu_custom_call.1} parent=1 // pred_region
      %s48 = ssub.s32 256, 256
      %49 = vsyncadd [#allocation6], %s48
      %s51 = sshll.u32 [#allocation7], 4
      %s52 = int_to_ptr.vmem [resolvable:$true] %s51
      %54 = dma.vmem_to_hbm [thread:$0]  %s52, 256, %s3, [#allocation6]
    $region21: #{tpu_custom_call.1} parent=1 // pred_fallthru
      _
    // Predicated region
    $region22: #{tpu_custom_call.1} parent=1 // pred_check
      _
    $region23: #{tpu_custom_call.1} parent=1 // pred_check_branch
      %56 = sbr.rel (0) target = $region25
    $region24: #{tpu_custom_call.1} parent=1 // pred_region
      %57 = dma.done [#allocation6], 256
    $region25: #{tpu_custom_call.1} parent=1 // pred_fallthru
      _
    %58 = vsyncpa [#allocation5], 1
    %59 = vsyncpa [#allocation6], 1

</llo_original>
